<compile_context>
chip_gen: v6e
topology: v6e:2x2x1
jax: 0.10.0
libtpu: 0.0.40
codegen_flags: <defaults>
</compile_context>

<pallas_src>
import functools
import math

import jax
import jax.numpy as jnp
from jax.experimental import pallas as pl
from jax.experimental.pallas import tpu as pltpu


def _arcface_kernel(tmin_ref, tmax_ref, xn_ref, w_ref, t_ref, o_ref, wn_ref,
                    *, s, m, eps, tn, use_target):
    j = pl.program_id(0)  # class tile (outer, "parallel")
    i = pl.program_id(1)  # row tile   (inner, "arbitrary")

    # Normalize this class tile of W once per class tile and cache it as bf16.
    # W's block index is constant along i, so HBM traffic for W is C*Fin*4
    # bytes total and the normalization runs once per weight element.
    @pl.when(i == 0)
    def _():
        w = w_ref[...].astype(jnp.float32)
        inv_nw = jax.lax.rsqrt(
            jnp.maximum(jnp.sum(w * w, axis=-1, keepdims=True), 1e-24))
        wn_ref[...] = (w * inv_nw).astype(wn_ref.dtype)

    # cos_theta = xn @ wn.T without an explicit transpose (contract last dims).
    cos_theta = jax.lax.dot_general(
        xn_ref[...],
        wn_ref[...],
        dimension_numbers=(((1,), (1,)), ((), ())),
        preferred_element_type=jnp.float32,
    )  # (tm, tn) f32

    if not use_target:
        o_ref[...] = cos_theta.astype(o_ref.dtype)
        return

    c = jnp.clip(cos_theta, -1.0 + eps, 1.0 - eps)

    cos_m = math.cos(m)
    sin_m = math.sin(m)

    # Tile-level gate: the margin epilogue only runs when some row of this row
    # tile has its target class inside [j*tn, (j+1)*tn).  Otherwise every
    # position is a non-target position and the reference reduces to
    # cos(acos(clip(c))) * s = clip(c) * s.
    lo = j * tn
    has_target = jnp.logical_and(tmax_ref[i] >= lo, tmin_ref[i] < lo + tn)

    @pl.when(has_target)
    def _():
        sin_theta = jnp.sqrt(jnp.maximum(1.0 - c * c, 0.0))
        margin_logit = c * cos_m - sin_theta * sin_m  # cos(theta + m)
        tm_b, tn_b = c.shape
        cls_idx = lo + jax.lax.broadcasted_iota(jnp.int32, (tm_b, tn_b), 1)
        one_hot = cls_idx == t_ref[...]
        # theta > pi - m  <=>  c < -cos(m): those target positions keep cos.
        mask = jnp.logical_and(one_hot, c >= -cos_m)
        o_ref[...] = (jnp.where(mask, margin_logit, c) * s).astype(o_ref.dtype)

    @pl.when(jnp.logical_not(has_target))
    def _():
        o_ref[...] = (c * s).astype(o_ref.dtype)


def arcface_forward(x, weight, target=None, *, s=64.0, m=0.5, eps=1e-6,
                    block_b=256, block_c=1024):
    """Pallas ArcFace forward.  x: (B, Fin), weight: (C, Fin), target: (B,) or None.
    Returns (B, C) f32 logits (or cos_theta if target is None)."""
    x = jnp.asarray(x, jnp.float32)
    weight = jnp.asarray(weight, jnp.float32)
    B, Fin = x.shape
    C, Fin_w = weight.shape
    assert Fin == Fin_w

    use_target = target is not None

    # Hoist x normalization out of the kernel; feed the MXU a bf16 operand.
    xn = x * jax.lax.rsqrt(
        jnp.maximum(jnp.sum(x * x, axis=-1, keepdims=True), 1e-24))
    xn = xn.astype(jnp.bfloat16)

    # ---- tile sizing (accurate VMEM model, sized against v7x's 64 MiB) ----
    tm = B if B <= block_b else block_b
    tn = C if C <= block_c else block_c

    def vmem_need(tm_, tn_):
        return (2 * tn_ * Fin * 4       # f32 W tile, double-buffered
                + tn_ * Fin * 2         # bf16 normalized-W scratch
                + 2 * tm_ * Fin * 2     # bf16 xn tile, double-buffered
                + 2 * tm_ * tn_ * 4     # f32 out tile, double-buffered
                + 2 * tm_ * 128 * 4)    # (tm,1) int32 target tile (lane-padded)

    budget = 40 * 1024 * 1024
    while vmem_need(tm, tn) > budget and tn > 256:
        tn = max(256, tn // 2)
    while vmem_need(tm, tn) > budget and tm > 64:
        tm = max(64, tm // 2)

    # Keep tiled block shapes (8, 128)-aligned.
    if tm < B:
        tm = max(8, (tm // 8) * 8)
    if tn < C:
        tn = max(128, (tn // 128) * 128)

    # Pad the (small) batch axis so row tiles are dense; C stays unpadded.
    B_pad = ((B + tm - 1) // tm) * tm if tm < B else B
    grid_i = B_pad // tm
    grid_j = pl.cdiv(C, tn)

    if B_pad > B:
        xn = jnp.pad(xn, ((0, B_pad - B), (0, 0)))

    if use_target:
        t = jnp.asarray(target, jnp.int32).reshape(-1)
        if B_pad > B:
            t = jnp.pad(t, (0, B_pad - B))
    else:
        t = jnp.zeros((B_pad,), jnp.int32)  # unused inside the kernel
    t_col = t.reshape(B_pad, 1)
    # Per-row-tile min/max target, scalar-prefetched to SMEM for tile gating.
    t_tiles = t.reshape(grid_i, tm)
    t_min = jnp.min(t_tiles, axis=1).astype(jnp.int32)
    t_max = jnp.max(t_tiles, axis=1).astype(jnp.int32)

    need = vmem_need(tm, tn)
    vmem_limit = int(min(max(need + need // 4 + (8 << 20), 24 << 20), 56 << 20))

    kernel = functools.partial(
        _arcface_kernel,
        s=float(s), m=float(m), eps=float(eps), tn=tn, use_target=use_target)

    out = pl.pallas_call(
        kernel,
        out_shape=jax.ShapeDtypeStruct((B_pad, C), jnp.float32),
        grid_spec=pltpu.PrefetchScalarGridSpec(
            num_scalar_prefetch=2,
            grid=(grid_j, grid_i),  # classes outer, rows inner
            in_specs=[
                pl.BlockSpec((tm, Fin), lambda j, i, tmn, tmx: (i, 0)),  # xn (bf16)
                pl.BlockSpec((tn, Fin), lambda j, i, tmn, tmx: (j, 0)),  # W  (f32)
                pl.BlockSpec((tm, 1), lambda j, i, tmn, tmx: (i, 0)),    # target
            ],
            out_specs=pl.BlockSpec((tm, tn), lambda j, i, tmn, tmx: (i, j)),
            scratch_shapes=[pltpu.VMEM((tn, Fin), jnp.bfloat16)],  # cached wn
        ),
        compiler_params=pltpu.CompilerParams(
            dimension_semantics=("parallel", "arbitrary"),
            vmem_limit_bytes=vmem_limit,
        ),
    )(t_min, t_max, xn, weight, t_col)

    return out[:B] if B_pad > B else out


def _arcface_ref(x, w, target, s, m, eps):
    """Pure-JAX f32 reference matching the PyTorch module."""
    xn = x / jnp.maximum(jnp.linalg.norm(x, axis=-1, keepdims=True), 1e-12)
    wn = w / jnp.maximum(jnp.linalg.norm(w, axis=-1, keepdims=True), 1e-12)
    cos_theta = xn @ wn.T
    if target is None:
        return cos_theta
    theta = jnp.arccos(jnp.clip(cos_theta, -1.0 + eps, 1.0 - eps))
    one_hot = jax.nn.one_hot(target, w.shape[0], dtype=cos_theta.dtype)
    mask = jnp.where(theta > (math.pi - m), jnp.zeros_like(one_hot), one_hot)
    return jnp.cos(jnp.where(mask > 0, theta + m, theta)) * s


if __name__ == "__main__":
    S, M, EPS = 64.0, 0.5, 1e-6
    key = jax.random.PRNGKey(0)

    # --- case 1: small, single-tile (matches ArcFace(32, 16), batch 8) -----
    B, IN_FEATURES, OUT_FEATURES = 8, 32, 16
    k_x, k_w, k_t, key = *jax.random.split(key, 3), jax.random.split(key, 4)[3]

    x = jax.random.normal(k_x, (B, IN_FEATURES), dtype=jnp.float32)
    bound = math.sqrt(6.0 / (IN_FEATURES + OUT_FEATURES))
    weight = jax.random.uniform(
        k_w, (OUT_FEATURES, IN_FEATURES), minval=-bound, maxval=bound,
        dtype=jnp.float32)
    target = jax.random.randint(k_t, (B,), 0, OUT_FEATURES, dtype=jnp.int32)

    logits = arcface_forward(x, weight, target, s=S, m=M, eps=EPS)
    cosine = arcface_forward(x, weight, None, s=S, m=M, eps=EPS)
    jax.block_until_ready(logits)
    jax.block_until_ready(cosine)
    assert logits.shape == (B, OUT_FEATURES) and cosine.shape == (B, OUT_FEATURES)

    ref_logits = _arcface_ref(x, weight, target, S, M, EPS)
    ref_cosine = _arcface_ref(x, weight, None, S, M, EPS)
    assert float(jnp.max(jnp.abs(cosine - ref_cosine))) < 5e-2
    assert float(jnp.max(jnp.abs(logits - ref_logits))) < 5e-2 * S

    # --- case 2: exercise the tiled path (grid > 1 on both axes, padding) --
    B2, F2, C2 = 20, 64, 300
    k_x2, k_w2, k_t2 = jax.random.split(key, 3)
    x2 = jax.random.normal(k_x2, (B2, F2), dtype=jnp.float32)
    b2 = math.sqrt(6.0 / (F2 + C2))
    w2 = jax.random.uniform(k_w2, (C2, F2), minval=-b2, maxval=b2,
                            dtype=jnp.float32)
    t2 = jax.random.randint(k_t2, (B2,), 0, C2, dtype=jnp.int32)

    logits2 = arcface_forward(x2, w2, t2, s=S, m=M, eps=EPS,
                              block_b=8, block_c=128)
    jax.block_until_ready(logits2)
    assert logits2.shape == (B2, C2)
    ref2 = _arcface_ref(x2, w2, t2, S, M, EPS)
    assert float(jnp.max(jnp.abs(logits2 - ref2))) < 5e-2 * S

    print("KERNEL_OK")
</pallas_src>

<mosaic_0001>
module attributes {stable_mosaic.version = 11 : i64} {
  func.func @_arcface_kernel(%arg0: i32, %arg1: i32, %arg2: memref<1xi32, #tpu.memory_space<smem>>, %arg3: memref<1xi32, #tpu.memory_space<smem>>, %arg4: memref<8x32xbf16, #tpu.memory_space<vmem>>, %arg5: memref<16x32xf32, #tpu.memory_space<vmem>>, %arg6: memref<8x1xi32, #tpu.memory_space<vmem>>, %arg7: memref<8x16xf32, #tpu.memory_space<vmem>>, %arg8: memref<16x32xbf16, #tpu.memory_space<vmem>>) attributes {dimension_semantics = [#tpu.dimension_semantics<parallel>, #tpu.dimension_semantics<arbitrary>], iteration_bounds = array<i64: 1, 1>, scalar_prefetch = 2 : i64, scratch_operands = 1 : i64, tpu.core_type = #tpu.core_type<tc>, window_params = [{transform_indices = @transform_0, window_bounds = array<i64: 8, 32>}, {transform_indices = @transform_1, window_bounds = array<i64: 16, 32>}, {transform_indices = @transform_2, window_bounds = array<i64: 8, 1>}, {transform_indices = @transform_3, window_bounds = array<i64: 8, 16>}]} {
    %c0_i32 = arith.constant 0 : i32
    %0 = arith.cmpi eq, %arg1, %c0_i32 : i32
    %1 = arith.extui %0 : i1 to i32
    %c0_i32_0 = arith.constant 0 : i32
    %2 = arith.cmpi ne, %1, %c0_i32_0 : i32
    scf.if %2 {
      %c0_9 = arith.constant 0 : index
      %c0_10 = arith.constant 0 : index
      %24 = vector.load %arg5[%c0_9, %c0_10] : memref<16x32xf32, #tpu.memory_space<vmem>>, vector<16x32xf32>
      %25 = arith.mulf %24, %24 : vector<16x32xf32>
      %cst_11 = arith.constant dense<0.000000e+00> : vector<16xf32>
      %26 = vector.multi_reduction <add>, %25, %cst_11 [1] : vector<16x32xf32> to vector<16xf32>
      %27 = vector.shape_cast %26 : vector<16xf32> to vector<16x1xf32>
      %cst_12 = arith.constant 1.000000e-24 : f32
      %28 = vector.broadcast %cst_12 : f32 to vector<16x1xf32>
      %29 = arith.maximumf %27, %28 : vector<16x1xf32>
      %30 = math.rsqrt %29 : vector<16x1xf32>
      %31 = vector.broadcast %30 : vector<16x1xf32> to vector<16x32xf32>
      %32 = arith.mulf %24, %31 : vector<16x32xf32>
      %33 = arith.truncf %32 : vector<16x32xf32> to vector<16x32xbf16>
      %c0_13 = arith.constant 0 : index
      %c0_14 = arith.constant 0 : index
      %34 = vector.load %arg8[%c0_13, %c0_14] : memref<16x32xbf16, #tpu.memory_space<vmem>>, vector<16x32xbf16>
      tpu.vector_store %arg8[%c0_13, %c0_14], %33 {strides = array<i32>} : memref<16x32xbf16, #tpu.memory_space<vmem>>, vector<16x32xbf16>,
    } else {
    }
    %c0 = arith.constant 0 : index
    %c0_1 = arith.constant 0 : index
    %3 = vector.load %arg4[%c0, %c0_1] : memref<8x32xbf16, #tpu.memory_space<vmem>>, vector<8x32xbf16>
    %c0_2 = arith.constant 0 : index
    %c0_3 = arith.constant 0 : index
    %4 = vector.load %arg8[%c0_2, %c0_3] : memref<16x32xbf16, #tpu.memory_space<vmem>>, vector<16x32xbf16>
    %cst = arith.constant dense<0.000000e+00> : vector<8x16xf32>
    %5 = tpu.matmul %3, %4, %cst {dimension_numbers = #tpu.dot_dimension_numbers<[1], [1], [0], [0], [0, 0, 1, 0], [], []>} : vector<8x32xbf16>, vector<16x32xbf16>, vector<8x16xf32> -> vector<8x16xf32>
    %cst_4 = arith.constant -0.999998986 : f32
    %cst_5 = arith.constant 0.999998986 : f32
    %6 = vector.broadcast %cst_4 : f32 to vector<8x16xf32>
    %7 = arith.maximumf %6, %5 : vector<8x16xf32>
    %8 = vector.broadcast %cst_5 : f32 to vector<8x16xf32>
    %9 = arith.minimumf %8, %7 : vector<8x16xf32>
    %c16_i32 = arith.constant 16 : i32
    %10 = arith.muli %arg0, %c16_i32 : i32
    %11 = arith.index_cast %arg1 : i32 to index
    %12 = memref.load %arg3[%11] : memref<1xi32, #tpu.memory_space<smem>>
    %13 = arith.cmpi sge, %12, %10 : i32
    %14 = arith.index_cast %arg1 : i32 to index
    %15 = memref.load %arg2[%14] : memref<1xi32, #tpu.memory_space<smem>>
    %c16_i32_6 = arith.constant 16 : i32
    %16 = arith.addi %10, %c16_i32_6 : i32
    %17 = arith.cmpi slt, %15, %16 : i32
    %18 = arith.andi %13, %17 : i1
    %19 = arith.extui %18 : i1 to i32
    %c0_i32_7 = arith.constant 0 : i32
    %20 = arith.cmpi ne, %19, %c0_i32_7 : i32
    scf.if %20 {
      %24 = arith.mulf %9, %9 : vector<8x16xf32>
      %cst_9 = arith.constant 1.000000e+00 : f32
      %25 = vector.broadcast %cst_9 : f32 to vector<8x16xf32>
      %26 = arith.subf %25, %24 : vector<8x16xf32>
      %cst_10 = arith.constant 0.000000e+00 : f32
      %27 = vector.broadcast %cst_10 : f32 to vector<8x16xf32>
      %28 = arith.maximumf %26, %27 : vector<8x16xf32>
      %29 = math.sqrt %28 : vector<8x16xf32>
      %cst_11 = arith.constant 0.87758255 : f32
      %30 = vector.broadcast %cst_11 : f32 to vector<8x16xf32>
      %31 = arith.mulf %9, %30 : vector<8x16xf32>
      %cst_12 = arith.constant 0.47942555 : f32
      %32 = vector.broadcast %cst_12 : f32 to vector<8x16xf32>
      %33 = arith.mulf %29, %32 : vector<8x16xf32>
      %34 = arith.subf %31, %33 : vector<8x16xf32>
      %35 = tpu.iota {dimensions = array<i32: 1>} : vector<8x16xi32>
      %36 = vector.broadcast %10 : i32 to vector<8x16xi32>
      %37 = arith.addi %36, %35 : vector<8x16xi32>
      %c0_13 = arith.constant 0 : index
      %c0_14 = arith.constant 0 : index
      %38 = vector.load %arg6[%c0_13, %c0_14] : memref<8x1xi32, #tpu.memory_space<vmem>>, vector<8x1xi32>
      %39 = vector.broadcast %38 : vector<8x1xi32> to vector<8x16xi32>
      %40 = arith.cmpi eq, %37, %39 : vector<8x16xi32>
      %cst_15 = arith.constant -0.87758255 : f32
      %41 = vector.broadcast %cst_15 : f32 to vector<8x16xf32>
      %42 = arith.cmpf oge, %9, %41 : vector<8x16xf32>
      %43 = arith.andi %40, %42 : vector<8x16xi1>
      %44 = arith.select %43, %34, %9 : vector<8x16xi1>, vector<8x16xf32>
      %cst_16 = arith.constant 6.400000e+01 : f32
      %45 = vector.broadcast %cst_16 : f32 to vector<8x16xf32>
      %46 = arith.mulf %44, %45 : vector<8x16xf32>
      %c0_17 = arith.constant 0 : index
      %c0_18 = arith.constant 0 : index
      %47 = vector.load %arg7[%c0_17, %c0_18] : memref<8x16xf32, #tpu.memory_space<vmem>>, vector<8x16xf32>
      tpu.vector_store %arg7[%c0_17, %c0_18], %46 {strides = array<i32>} : memref<8x16xf32, #tpu.memory_space<vmem>>, vector<8x16xf32>,
    } else {
    }
    %true = arith.constant true
    %21 = arith.xori %18, %true : i1
    %22 = arith.extui %21 : i1 to i32
    %c0_i32_8 = arith.constant 0 : i32
    %23 = arith.cmpi ne, %22, %c0_i32_8 : i32
    scf.if %23 {
      %cst_9 = arith.constant 6.400000e+01 : f32
      %24 = vector.broadcast %cst_9 : f32 to vector<8x16xf32>
      %25 = arith.mulf %9, %24 : vector<8x16xf32>
      %c0_10 = arith.constant 0 : index
      %c0_11 = arith.constant 0 : index
      %26 = vector.load %arg7[%c0_10, %c0_11] : memref<8x16xf32, #tpu.memory_space<vmem>>, vector<8x16xf32>
      tpu.vector_store %arg7[%c0_10, %c0_11], %25 {strides = array<i32>} : memref<8x16xf32, #tpu.memory_space<vmem>>, vector<8x16xf32>,
    } else {
    }
    return
  }
  func.func @transform_0(%arg0: i32, %arg1: i32, %arg2: memref<1xi32, #tpu.memory_space<smem>>, %arg3: memref<1xi32, #tpu.memory_space<smem>>) -> (i32, i32) {
    %c0_i32 = arith.constant 0 : i32
    %c0_i32_0 = arith.constant 0 : i32
    return %arg1, %c0_i32 : i32, i32
  }
  func.func @transform_1(%arg0: i32, %arg1: i32, %arg2: memref<1xi32, #tpu.memory_space<smem>>, %arg3: memref<1xi32, #tpu.memory_space<smem>>) -> (i32, i32) {
    %c0_i32 = arith.constant 0 : i32
    %c0_i32_0 = arith.constant 0 : i32
    return %arg0, %c0_i32 : i32, i32
  }
  func.func @transform_2(%arg0: i32, %arg1: i32, %arg2: memref<1xi32, #tpu.memory_space<smem>>, %arg3: memref<1xi32, #tpu.memory_space<smem>>) -> (i32, i32) {
    %c0_i32 = arith.constant 0 : i32
    %c0_i32_0 = arith.constant 0 : i32
    return %arg1, %c0_i32 : i32, i32
  }
  func.func @transform_3(%arg0: i32, %arg1: i32, %arg2: memref<1xi32, #tpu.memory_space<smem>>, %arg3: memref<1xi32, #tpu.memory_space<smem>>) -> (i32, i32) {
    %c0_i32 = arith.constant 0 : i32
    return %arg1, %arg0 : i32, i32
  }
}

</mosaic_0001>

<llo_original>
// kernel: tpu_custom_call.1
$region0: #{tpu_custom_call.1}
  #allocation0 [shape = 'u32[]', space=smem, size = 0x4, offset = 0x4, fixed_abs, tag = 'smem constant byte address 0x4 - core index']
  #allocation1 [shape = 'u32[144,128]{1,0:T(1,128)}', space=vmem, size = 0x12000, scoped, tag = 'internal scratch']
  #allocation2 [shape = 'bf16[16,32]{1,0:T(8,128)(2,1)}', space=vmem, size = 0x1000, scoped, tag = 'scratch operand']
  #allocation3 [shape = 's32[1]{0}', space=sflag, size = 0x4, scoped, tag = 'scoped memory for tpu_custom_call.1']
  #allocation4 [shape = 's32[1]{0:T(128)S(6)}', space=smem, size = 0x200, scoped, tag = 'prefetched SMEM operand 0']
  #allocation5 [shape = 's32[1]{0:T(128)S(6)}', space=smem, size = 0x200, scoped, tag = 'prefetched SMEM operand 1']
  %s0 = inlined_call_operand.<no memory space> [shape: s32[1], index: 0, kind: input, shape index: {}]
  %s1 = inlined_call_operand.<no memory space> [shape: s32[1], index: 1, kind: input, shape index: {}]
  %s2 = inlined_call_operand.vmem [shape: bf16[8,32], index: 2, kind: input, shape index: {}]
  %s3 = inlined_call_operand.hbm [shape: f32[16,32], index: 3, kind: input, shape index: {}]
  %s4 = inlined_call_operand.vmem [shape: s32[8,1], index: 4, kind: input, shape index: {}]
  %s5 = inlined_call_operand.hbm [shape: f32[8,16], index: 5, kind: output, shape index: {}]
  %s6 = sld [smem:[#allocation0]]
  $region38: #{tpu_custom_call.1} parent=0
    _
  %s8 = ssub.s32 1, %s6
  %s9 = scalar_select 0, %s8, %s6
  %10 = sst [smem:[#allocation4]] %s0
  %11 = sst [smem:[#allocation5]] %s1
  $region1: #{tpu_custom_call.1} parent=0
    #allocation6 [shape = 'u8[8192]{0}', space=vmem, size = 0x2000, scoped, tag = 'input window, operand 3, single buffered']
    #allocation7 [shape = 's32[1]{0}', space=sflag, size = 0x4, scoped, tag = 'scoped memory for tpu_custom_call.1']
    #allocation8 [shape = 's32[1]{0}', space=sflag, size = 0x4, scoped, tag = 'scoped memory for tpu_custom_call.1']
    #allocation9 [shape = 'u8[4096]{0}', space=vmem, size = 0x1000, scoped, tag = 'output window, operand 0, single buffered']
    %12 = vsyncpa [#allocation7], 0
    %13 = vsyncpa [#allocation8], 0
    // Predicated region
    $region2: #{tpu_custom_call.1} parent=1 // pred_check
      _
    $region3: #{tpu_custom_call.1} parent=1 // pred_check_branch
      %15 = sbr.rel (0) target = $region5
    $region4: #{tpu_custom_call.1} parent=1 // pred_region
      _
    $region5: #{tpu_custom_call.1} parent=1 // pred_fallthru
      _
    // Predicated region
    $region6: #{tpu_custom_call.1} parent=1 // pred_check
      _
    $region7: #{tpu_custom_call.1} parent=1 // pred_check_branch
      %17 = sbr.rel (0) target = $region9
    $region8: #{tpu_custom_call.1} parent=1 // pred_region
      %s19 = ssub.s32 256, 256
      %20 = vsyncadd [#allocation7], %s19
      %s21 = sshll.u32 [#allocation6], 4
      %s22 = int_to_ptr.vmem [resolvable:$true] %s21
      %27 = dma.hbm_to_vmem [thread:$0]  %s3, 256, %s22, [#allocation7], 128, 128, 8
    $region9: #{tpu_custom_call.1} parent=1 // pred_fallthru
      _
    // Predicated region
    $region10: #{tpu_custom_call.1} parent=1 // pred_check
      _
    $region11: #{tpu_custom_call.1} parent=1 // pred_check_branch
      %29 = sbr.rel (0) target = $region13
    $region12: #{tpu_custom_call.1} parent=1 // pred_region
      _
    $region13: #{tpu_custom_call.1} parent=1 // pred_fallthru
      _
    // Predicated region
    $region14: #{tpu_custom_call.1} parent=1 // pred_check
      _
    $region15: #{tpu_custom_call.1} parent=1 // pred_check_branch
      %31 = sbr.rel (0) target = $region17
    $region16: #{tpu_custom_call.1} parent=1 // pred_region
      %32 = dma.done [#allocation7], 256
    $region17: #{tpu_custom_call.1} parent=1 // pred_fallthru
      _
    %p34 = scmp.eq.s32.totalorder 0, 0
    // Predicated region
    $region18: #{tpu_custom_call.1} parent=1 // pred_check
      %p35 = pneg %p34
    $region19: #{tpu_custom_call.1} parent=1 // pred_check_branch
      %37 = sbr.rel (%p35) target = $region21
    $region20: #{tpu_custom_call.1} parent=1 // pred_region
      %v38 = vld [vmem:[#allocation6] sm:$0xff]
      %v39 = vld [vmem:[#allocation6 + $0x8] sm:$0xff]
      %v40 = vmul.f32 %v38, %v38
      %v41 = vmul.f32 %v39, %v39
      %vm42 = vcmask 261120
      %v43 = vsel %vm42, %v40, 0.0
      %44 = vadd.xlane.f32.xlu0 %v43
      %v45 = vpop.xlane.xlu0 %44
      %v46 = vsel %vm42, %v41, 0.0
      %47 = vadd.xlane.f32.xlu0 %v46
      %v48 = vpop.xlane.xlu0 %47
      %v49 = vmax.f32 %v45, 1e-24
      %v50 = vmax.f32 %v48, 1e-24
      %v51 = vrsqrt.pop %v49
      %v52 = vrsqrt.pop %v50
      %v53 = vmul.f32 %v38, %v51
      %v54 = vmul.f32 %v39, %v52
      %v55 = vpack.c.bf16 %v54, %v53
      %v57 = vunpack.c.l.b16 %v55
      %v58 = vunpack.c.h.b16 %v55
      %v59 = vpack.c.b16 %v57, %v57
      %v60 = vpack.c.b16 %v58, %v58
      %vm63 = vcmask 257024
      %64 = vst.msk [vmem:[#allocation2] sm:$0xf] %vm63, %v59
      %65 = vst.msk [vmem:[#allocation2 + $0x4] sm:$0xf] %vm63, %v60
    $region21: #{tpu_custom_call.1} parent=1 // pred_fallthru
      _
    %v66 = vld [vmem:[%s2] sm:$0xf]
    %v67 = vld [vmem:[#allocation2] sm:$0xf]
    %v68 = vld [vmem:[#allocation2 + $0x4] sm:$0xf]
    %v71 = vunpack.c.l.b16 %v67
    %v72 = vunpack.c.l.b16 %v68
    %v73 = vpack.c.b16 %v72, %v71
    %vm74 = vcmask 261120
    %v76 = vsel %vm74, %v66, 0
    %v79 = vsel %vm74, %v73, 0
    %81 = vmatprep.subr.bf16.mxu0 0
    %82 = vmatpush1.bf16.xpose.msra.mxu0 0
    %83 = vmatprep.subr.bf16.mxu0 0
    %84 = vmatpush1.bf16.xpose.msra.mxu0 0
    %85 = vmatprep.subr.bf16.mxu0 0
    %86 = vmatpush1.bf16.xpose.msra.mxu0 0
    %87 = vmatprep.subr.bf16.mxu0 0
    %88 = vmatpush1.bf16.xpose.msra.mxu0 0
    %89 = vmatprep.subr.bf16.mxu0 0
    %90 = vmatpush1.bf16.xpose.msra.mxu0 0
    %91 = vmatprep.subr.bf16.mxu0 0
    %92 = vmatpush1.bf16.xpose.msra.mxu0 0
    %93 = vmatprep.subr.bf16.mxu0 0
    %94 = vmatpush1.bf16.xpose.msra.mxu0 0
    %95 = vmatprep.subr.bf16.mxu0 0
    %96 = vmatpush1.bf16.xpose.msra.mxu0 %v79
    %97 = vmatprep.subr.bf16.mxu0 0
    %98 = vmatpush2.bf16.xpose.msra.mxu0 0
    %99 = vmatprep.subr.bf16.mxu0 0
    %100 = vmatpush2.bf16.xpose.msra.mxu0 0
    %101 = vmatprep.subr.bf16.mxu0 0
    %102 = vmatpush2.bf16.xpose.msra.mxu0 0
    %103 = vmatprep.subr.bf16.mxu0 0
    %104 = vmatpush2.bf16.xpose.msra.mxu0 0
    %105 = vmatprep.subr.bf16.mxu0 0
    %106 = vmatpush2.bf16.xpose.msra.mxu0 0
    %107 = vmatprep.subr.bf16.mxu0 0
    %108 = vmatpush2.bf16.xpose.msra.mxu0 0
    %109 = vmatprep.subr.bf16.mxu0 0
    %110 = vmatpush2.bf16.xpose.msra.mxu0 0
    %111 = vmatprep.subr.bf16.mxu0 0
    %112 = vmatpush2.bf16.xpose.msra.mxu0 0
    %113 = vmatprep.mubr.bf16.mxu0 0
    %114 = vmatmul.mubr.bf16.gmra.mxu0 %v76
    %v115 = vpop.f32.mrf.mxu0
    %v116 = vadd.f32 0.0, %v115
    %v117 = vpop.f32.mrf.mxu0
    %v118 = vpop.f32.mrf.mxu0
    %v119 = vpop.f32.mrf.mxu0
    %120 = vdwg.mxu0
    %v121 = vmax.f32 %v116, -0.999999
    %v122 = vmin.f32 %v121, 0.999999
    %s123 = smul.u32 0, 16
    %s124 = sld [smem:[#allocation5]]
    %p125 = scmp.ge.s32.totalorder %s124, %s123
    %s126 = sld [smem:[#allocation4]]
    %s127 = sadd.s32 %s123, 16
    %p128 = scmp.lt.s32.totalorder %s126, %s127
    %p129 = pnand %p125, %p128
    %p130 = pneg %p129
    // Predicated region
    $region22: #{tpu_custom_call.1} parent=1 // pred_check
      _
    $region23: #{tpu_custom_call.1} parent=1 // pred_check_branch
      %132 = sbr.rel (%p129) target = $region25
    $region24: #{tpu_custom_call.1} parent=1 // pred_region
      %v133 = vmul.f32 %v122, %v122
      %v134 = vsub.f32 1.0, %v133
      %v135 = vmax.f32 %v134, 0.0
      %v136 = vrsqrt.pop %v135
      %v137 = vmul.f32 %v135, %v136
      %vm138 = vcmp.eq.f32.partialorder %v135, inf
      %v139 = vsel %vm138, %v135, %v137
      %vm140 = vcmp.eq.f32.partialorder %v135, 0.0
      %v141 = vand.u32 %v135, 2147483648
      %v142 = vsel %vm140, %v141, %v139
      %v143 = vmul.f32 %v122, 0.87758255
      %v144 = vmul.f32 %v142, 0.47942555
      %v145 = vsub.f32 %v143, %v144
      %v146 = vlaneseq
      %v147 = vand.u32 %v146, 127
      %v148 = vstv %s123
      %v149 = vadd.s32 %v148, %v147
      %v150 = vld [vmem:[%s4] sm:$0xff]
      %151 = vset.pattern.permute.xlu0 0
      %152 = vperm.xlu0 %151, %v150
      %v153 = vpop.permute.xlu0 %152
      %vm154 = vcmp.eq.s32.totalorder %v149, %v153
      %vm155 = vcmp.ge.f32.partialorder %v122, -0.87758255
      %vm156 = vmand %vm154, %vm155
      %v157 = vsel %vm156, %v145, %v122
      %v158 = vmul.f32 %v157, 64.0
      %vm159 = vcmask 130048
      %160 = vst.msk [vmem:[#allocation9] sm:$0xff] %vm159, %v158
    $region25: #{tpu_custom_call.1} parent=1 // pred_fallthru
      _
    %p161 = pneg %p130
    // Predicated region
    $region26: #{tpu_custom_call.1} parent=1 // pred_check
      _
    $region27: #{tpu_custom_call.1} parent=1 // pred_check_branch
      %163 = sbr.rel (%p130) target = $region29
    $region28: #{tpu_custom_call.1} parent=1 // pred_region
      %v164 = vmul.f32 %v122, 64.0
      %vm165 = vcmask 130048
      %166 = vst.msk [vmem:[#allocation9] sm:$0xff] %vm165, %v164
    $region29: #{tpu_custom_call.1} parent=1 // pred_fallthru
      _
    // Predicated region
    $region30: #{tpu_custom_call.1} parent=1 // pred_check
      _
    $region31: #{tpu_custom_call.1} parent=1 // pred_check_branch
      %168 = sbr.rel (0) target = $region33
    $region32: #{tpu_custom_call.1} parent=1 // pred_region
      %s170 = ssub.s32 128, 128
      %171 = vsyncadd [#allocation8], %s170
      %s173 = sshll.u32 [#allocation9], 4
      %s174 = int_to_ptr.vmem [resolvable:$true] %s173
      %176 = dma.vmem_to_hbm [thread:$0]  %s174, 128, %s5, [#allocation8]
    $region33: #{tpu_custom_call.1} parent=1 // pred_fallthru
      _
    // Predicated region
    $region34: #{tpu_custom_call.1} parent=1 // pred_check
      _
    $region35: #{tpu_custom_call.1} parent=1 // pred_check_branch
      %178 = sbr.rel (0) target = $region37
    $region36: #{tpu_custom_call.1} parent=1 // pred_region
      %179 = dma.done [#allocation8], 128
    $region37: #{tpu_custom_call.1} parent=1 // pred_fallthru
      _
    %180 = vsyncpa [#allocation7], 1
    %181 = vsyncpa [#allocation8], 1

</llo_original>
